<compile_context>
chip_gen: v7x
topology: tpu7x:2x2x1
jax: 0.10.0
libtpu: 0.0.40
codegen_flags: <defaults>
</compile_context>

<pallas_src>
import functools

import jax
import jax.numpy as jnp
from jax.experimental import pallas as pl
from jax.experimental.pallas import tpu as pltpu


def _pointcloud_kernel(feat_ref, noise_ref, w1_ref, b1_ref, w2_ref, b2_ref,
                       o_ref, *, noise_scale):
    feats = feat_ref[...]                 # (B, D) f32
    nz = noise_ref[...]                   # (B, P) f32  (the (B, P, 1) noise, squeezed)

    # feature_transform: Linear(1 -> 32) -> ReLU -> Linear(32 -> 1), on the VPU.
    # h[b, p, j] = nz[b, p] * w1[j] + b1[j]
    h = nz[:, :, None] * w1_ref[...] + b1_ref[...]            # (B, P, 32)
    h = jnp.maximum(h, 0.0)
    # t[b, p] = sum_j h[b, p, j] * w2[j] + b2
    t = jnp.sum(h * w2_ref[...], axis=-1) + b2_ref[...]       # (B, P)

    # point_cloud + expanded transformed noise * noise_scale
    o_ref[...] = feats[:, None, :] + noise_scale * t[:, :, None]   # (B, P, D)


def pointcloud_generator_forward(features, noise_base, params, *, noise_scale=0.1):
    B, D = features.shape
    P = noise_base.shape[1]
    noise2d = noise_base.reshape(B, P)

    kernel = functools.partial(_pointcloud_kernel, noise_scale=float(noise_scale))
    vmem = lambda: pl.BlockSpec(memory_space=pltpu.MemorySpace.VMEM)

    return pl.pallas_call(
        kernel,
        out_shape=jax.ShapeDtypeStruct((B, P, D), jnp.float32),
        in_specs=[vmem() for _ in range(6)],   # whole arrays resident in VMEM, no pipelining
        out_specs=vmem(),
    )(features, noise2d, params["w1"], params["b1"], params["w2"], params["b2"])


def init_params(key):
    """Parameters of nn.Sequential(Linear(1,32), ReLU(), Linear(32,1)).

    w1 = Linear(1,32).weight.T -> (1, 32)     b1 = Linear(1,32).bias -> (1, 32)
    w2 = Linear(32,1).weight   -> (1, 32)     b2 = Linear(32,1).bias -> (1, 1)
    """
    k1, k2, k3, k4 = jax.random.split(key, 4)
    w1 = jax.random.normal(k1, (1, 32), jnp.float32) * 0.5
    b1 = jax.random.normal(k2, (1, 32), jnp.float32) * 0.1
    w2 = jax.random.normal(k3, (1, 32), jnp.float32) * 0.2
    b2 = jax.random.normal(k4, (1, 1), jnp.float32) * 0.1
    return dict(w1=w1, b1=b1, w2=w2, b2=b2)


def reference_forward(features, noise_base, params, noise_scale):
    """Pure-JAX mirror of PointCloudGenerator.forward (given the same noise)."""
    B, D = features.shape
    P = noise_base.shape[1]
    point_cloud = jnp.broadcast_to(features[:, None, :], (B, P, D))
    h = noise_base @ params["w1"] + params["b1"]              # (B, P, 32)
    h = jnp.maximum(h, 0.0)
    t = h @ params["w2"].T + params["b2"]                     # (B, P, 1)
    noise = t * noise_scale                                   # broadcast over D
    return point_cloud + noise


if __name__ == "__main__":
    key = jax.random.PRNGKey(0)
    k_feat, k_noise, k_p = jax.random.split(key, 3)

    B, D = 2, 128          # D = 128 -> naturally lane-dense output store
    num_points = 64        # module default
    noise_scale = 0.1      # module default

    features = jax.random.normal(k_feat, (B, D), jnp.float32)
    # NOTE: torch.randn(B, P, 1) generated wrapper-side with an explicit key.
    noise_base = jax.random.normal(k_noise, (B, num_points, 1), jnp.float32)
    params = init_params(k_p)

    out = pointcloud_generator_forward(
        features, noise_base, params, noise_scale=noise_scale)
    out = jax.block_until_ready(out)

    ref = reference_forward(features, noise_base, params, noise_scale)
    assert out.shape == (B, num_points, D)
    assert jnp.allclose(out, ref, rtol=1e-4, atol=1e-4), (
        f"max abs diff {jnp.max(jnp.abs(out - ref))}")

    print("KERNEL_OK")
</pallas_src>

<mosaic_0001>
module attributes {stable_mosaic.version = 11 : i64} {
  func.func @_pointcloud_kernel(%arg0: memref<2x128xf32, #tpu.memory_space<vmem>>, %arg1: memref<2x64xf32, #tpu.memory_space<vmem>>, %arg2: memref<1x32xf32, #tpu.memory_space<vmem>>, %arg3: memref<1x32xf32, #tpu.memory_space<vmem>>, %arg4: memref<1x32xf32, #tpu.memory_space<vmem>>, %arg5: memref<1x1xf32, #tpu.memory_space<vmem>>, %arg6: memref<2x64x128xf32, #tpu.memory_space<vmem>>) attributes {dimension_semantics = [], scalar_prefetch = 0 : i64, scratch_operands = 0 : i64, tpu.core_type = #tpu.core_type<tc>} {
    %c0 = arith.constant 0 : index
    %c0_0 = arith.constant 0 : index
    %0 = vector.load %arg0[%c0, %c0_0] : memref<2x128xf32, #tpu.memory_space<vmem>>, vector<2x128xf32>
    %c0_1 = arith.constant 0 : index
    %c0_2 = arith.constant 0 : index
    %1 = vector.load %arg1[%c0_1, %c0_2] : memref<2x64xf32, #tpu.memory_space<vmem>>, vector<2x64xf32>
    %2 = vector.shape_cast %1 : vector<2x64xf32> to vector<2x64x1xf32>
    %c0_3 = arith.constant 0 : index
    %c0_4 = arith.constant 0 : index
    %3 = vector.load %arg2[%c0_3, %c0_4] : memref<1x32xf32, #tpu.memory_space<vmem>>, vector<1x32xf32>
    %4 = vector.shape_cast %3 : vector<1x32xf32> to vector<1x1x32xf32>
    %5 = vector.broadcast %2 : vector<2x64x1xf32> to vector<2x64x32xf32>
    %6 = vector.broadcast %4 : vector<1x1x32xf32> to vector<2x64x32xf32>
    %7 = arith.mulf %5, %6 : vector<2x64x32xf32>
    %c0_5 = arith.constant 0 : index
    %c0_6 = arith.constant 0 : index
    %8 = vector.load %arg3[%c0_5, %c0_6] : memref<1x32xf32, #tpu.memory_space<vmem>>, vector<1x32xf32>
    %9 = vector.shape_cast %8 : vector<1x32xf32> to vector<1x1x32xf32>
    %10 = vector.broadcast %9 : vector<1x1x32xf32> to vector<2x64x32xf32>
    %11 = arith.addf %7, %10 : vector<2x64x32xf32>
    %cst = arith.constant 0.000000e+00 : f32
    %12 = vector.broadcast %cst : f32 to vector<2x64x32xf32>
    %13 = arith.maximumf %11, %12 : vector<2x64x32xf32>
    %c0_7 = arith.constant 0 : index
    %c0_8 = arith.constant 0 : index
    %14 = vector.load %arg4[%c0_7, %c0_8] : memref<1x32xf32, #tpu.memory_space<vmem>>, vector<1x32xf32>
    %15 = vector.shape_cast %14 : vector<1x32xf32> to vector<1x1x32xf32>
    %16 = vector.broadcast %15 : vector<1x1x32xf32> to vector<2x64x32xf32>
    %17 = arith.mulf %13, %16 : vector<2x64x32xf32>
    %cst_9 = arith.constant dense<0.000000e+00> : vector<2x64xf32>
    %18 = vector.multi_reduction <add>, %17, %cst_9 [2] : vector<2x64x32xf32> to vector<2x64xf32>
    %c0_10 = arith.constant 0 : index
    %c0_11 = arith.constant 0 : index
    %19 = vector.load %arg5[%c0_10, %c0_11] : memref<1x1xf32, #tpu.memory_space<vmem>>, vector<1x1xf32>
    %20 = vector.broadcast %19 : vector<1x1xf32> to vector<2x64xf32>
    %21 = arith.addf %18, %20 : vector<2x64xf32>
    %22 = vector.shape_cast %0 : vector<2x128xf32> to vector<2x1x128xf32>
    %23 = vector.shape_cast %21 : vector<2x64xf32> to vector<2x64x1xf32>
    %cst_12 = arith.constant 1.000000e-01 : f32
    %24 = vector.broadcast %cst_12 : f32 to vector<2x64x1xf32>
    %25 = arith.mulf %24, %23 : vector<2x64x1xf32>
    %26 = vector.broadcast %22 : vector<2x1x128xf32> to vector<2x64x128xf32>
    %27 = vector.broadcast %25 : vector<2x64x1xf32> to vector<2x64x128xf32>
    %28 = arith.addf %26, %27 : vector<2x64x128xf32>
    %c0_13 = arith.constant 0 : index
    %c0_14 = arith.constant 0 : index
    %c0_15 = arith.constant 0 : index
    %29 = vector.load %arg6[%c0_13, %c0_14, %c0_15] : memref<2x64x128xf32, #tpu.memory_space<vmem>>, vector<2x64x128xf32>
    tpu.vector_store %arg6[%c0_13, %c0_14, %c0_15], %28 {strides = array<i32>} : memref<2x64x128xf32, #tpu.memory_space<vmem>>, vector<2x64x128xf32>,
    return
  }
}

</mosaic_0001>

<llo_original>
// kernel: tpu_custom_call.1
$region0: #{tpu_custom_call.1}
  #allocation0 [shape = 'u32[]', space=smem, size = 0x4, offset = 0x4, fixed_abs, tag = 'smem constant byte address 0x4 - core index']
  #allocation1 [shape = 'u32[144,128]{1,0:T(1,128)}', space=vmem, size = 0x12000, scoped, tag = 'internal scratch']
  #allocation2 [shape = 'f32[1,1]{1,0:T(1,128)S(1)}', space=vmem, size = 0x200, scoped, tag = 'scoped memory for tpu_custom_call.1']
  %s0 = inlined_call_operand.vmem [shape: f32[2,128], index: 0, kind: input, shape index: {}]
  %s1 = inlined_call_operand.vmem [shape: f32[2,64], index: 1, kind: input, shape index: {}]
  %s2 = inlined_call_operand.vmem [shape: f32[1,32], index: 2, kind: input, shape index: {}]
  %s3 = inlined_call_operand.vmem [shape: f32[1,32], index: 3, kind: input, shape index: {}]
  %s4 = inlined_call_operand.vmem [shape: f32[1,32], index: 4, kind: input, shape index: {}]
  %s5 = inlined_call_operand.<no memory space> [shape: f32[1,1], index: 5, kind: input, shape index: {}]
  %s6 = inlined_call_operand.hbm [shape: f32[2,64,128], index: 6, kind: output, shape index: {}]
  %s7 = sld [smem:[#allocation0]]
  $region34: #{tpu_custom_call.1} parent=0
    _
  %s9 = ssub.s32 1, %s7
  %s10 = scalar_select 0, %s9, %s7
  %v11 = vstv %s5
  %12 = vst [vmem:[#allocation2] sm:$0x1] %v11
  $region1: #{tpu_custom_call.1} parent=0
    #allocation3 [shape = 'u8[65536]{0}', space=vmem, size = 0x10000, scoped, tag = 'output window, operand 0, single buffered']
    #allocation4 [shape = 's32[1]{0}', space=sflag, size = 0x4, scoped, tag = 'scoped memory for tpu_custom_call.1']
    %13 = vsyncpa [#allocation4], 0
    // Predicated region
    $region2: #{tpu_custom_call.1} parent=1 // pred_check
      _
    $region3: #{tpu_custom_call.1} parent=1 // pred_check_branch
      %15 = sbr.rel (0) target = $region5
    $region4: #{tpu_custom_call.1} parent=1 // pred_region
      _
    $region5: #{tpu_custom_call.1} parent=1 // pred_fallthru
      _
    // Predicated region
    $region6: #{tpu_custom_call.1} parent=1 // pred_check
      _
    $region7: #{tpu_custom_call.1} parent=1 // pred_check_branch
      %17 = sbr.rel (0) target = $region9
    $region8: #{tpu_custom_call.1} parent=1 // pred_region
      _
    $region9: #{tpu_custom_call.1} parent=1 // pred_fallthru
      _
    // Predicated region
    $region10: #{tpu_custom_call.1} parent=1 // pred_check
      _
    $region11: #{tpu_custom_call.1} parent=1 // pred_check_branch
      %19 = sbr.rel (0) target = $region13
    $region12: #{tpu_custom_call.1} parent=1 // pred_region
      _
    $region13: #{tpu_custom_call.1} parent=1 // pred_fallthru
      _
    // Predicated region
    $region14: #{tpu_custom_call.1} parent=1 // pred_check
      _
    $region15: #{tpu_custom_call.1} parent=1 // pred_check_branch
      %21 = sbr.rel (0) target = $region17
    $region16: #{tpu_custom_call.1} parent=1 // pred_region
      _
    $region17: #{tpu_custom_call.1} parent=1 // pred_fallthru
      _
    // Predicated region
    $region18: #{tpu_custom_call.1} parent=1 // pred_check
      _
    $region19: #{tpu_custom_call.1} parent=1 // pred_check_branch
      %23 = sbr.rel (0) target = $region21
    $region20: #{tpu_custom_call.1} parent=1 // pred_region
      _
    $region21: #{tpu_custom_call.1} parent=1 // pred_fallthru
      _
    // Predicated region
    $region22: #{tpu_custom_call.1} parent=1 // pred_check
      _
    $region23: #{tpu_custom_call.1} parent=1 // pred_check_branch
      %25 = sbr.rel (0) target = $region25
    $region24: #{tpu_custom_call.1} parent=1 // pred_region
      _
    $region25: #{tpu_custom_call.1} parent=1 // pred_fallthru
      _
    %v26 = vld [vmem:[%s0] sm:$0x3]
    %v27 = vld [vmem:[%s1] sm:$0x3]
    %v28 = vlaneseq
    %v29 = vshrl.u32 %v28, 7
    %v30 = vsub.s32 0, %v29
    %v31 = vrot.slane %v27, %v30
    %33 = vbcast.lane.b32.xlu0 %v31, 256
    %v34 = vpop.permute.xlu0 %33
    %s36 = sor.u32 256, 8
    %37 = vbcast.lane.b32.xlu0 %v31, %s36
    %v38 = vpop.permute.xlu0 %37
    %s40 = sor.u32 256, 16
    %41 = vbcast.lane.b32.xlu0 %v31, %s40
    %v42 = vpop.permute.xlu0 %41
    %s44 = sor.u32 256, 24
    %45 = vbcast.lane.b32.xlu0 %v31, %s44
    %v46 = vpop.permute.xlu0 %45
    %s48 = sor.u32 256, 32
    %49 = vbcast.lane.b32.xlu0 %v31, %s48
    %v50 = vpop.permute.xlu0 %49
    %s52 = sor.u32 256, 40
    %53 = vbcast.lane.b32.xlu0 %v31, %s52
    %v54 = vpop.permute.xlu0 %53
    %s56 = sor.u32 256, 48
    %57 = vbcast.lane.b32.xlu0 %v31, %s56
    %v58 = vpop.permute.xlu0 %57
    %s60 = sor.u32 256, 56
    %61 = vbcast.lane.b32.xlu0 %v31, %s60
    %v62 = vpop.permute.xlu0 %61
    %v63 = vlaneseq
    %v64 = vshrl.u32 %v63, 7
    %v65 = vsub.s32 1, %v64
    %v66 = vrot.slane %v27, %v65
    %68 = vbcast.lane.b32.xlu0 %v66, 256
    %v69 = vpop.permute.xlu0 %68
    %s71 = sor.u32 256, 8
    %72 = vbcast.lane.b32.xlu0 %v66, %s71
    %v73 = vpop.permute.xlu0 %72
    %s75 = sor.u32 256, 16
    %76 = vbcast.lane.b32.xlu0 %v66, %s75
    %v77 = vpop.permute.xlu0 %76
    %s79 = sor.u32 256, 24
    %80 = vbcast.lane.b32.xlu0 %v66, %s79
    %v81 = vpop.permute.xlu0 %80
    %s83 = sor.u32 256, 32
    %84 = vbcast.lane.b32.xlu0 %v66, %s83
    %v85 = vpop.permute.xlu0 %84
    %s87 = sor.u32 256, 40
    %88 = vbcast.lane.b32.xlu0 %v66, %s87
    %v89 = vpop.permute.xlu0 %88
    %s91 = sor.u32 256, 48
    %92 = vbcast.lane.b32.xlu0 %v66, %s91
    %v93 = vpop.permute.xlu0 %92
    %s95 = sor.u32 256, 56
    %96 = vbcast.lane.b32.xlu0 %v66, %s95
    %v97 = vpop.permute.xlu0 %96
    %v98 = vld [vmem:[%s2] sm:$0x1]
    %v100 = vlaneseq
    %v101 = vshrl.u32 %v100, 7
    %v102 = vsub.s32 0, %v101
    %v103 = vrot.slane %v98, %v102
    %v105 = vmul.f32 %v34, %v103
    %v106 = vmul.f32 %v38, %v103
    %v107 = vmul.f32 %v42, %v103
    %v108 = vmul.f32 %v46, %v103
    %v109 = vmul.f32 %v50, %v103
    %v110 = vmul.f32 %v54, %v103
    %v111 = vmul.f32 %v58, %v103
    %v112 = vmul.f32 %v62, %v103
    %v113 = vmul.f32 %v69, %v103
    %v114 = vmul.f32 %v73, %v103
    %v115 = vmul.f32 %v77, %v103
    %v116 = vmul.f32 %v81, %v103
    %v117 = vmul.f32 %v85, %v103
    %v118 = vmul.f32 %v89, %v103
    %v119 = vmul.f32 %v93, %v103
    %v120 = vmul.f32 %v97, %v103
    %v121 = vld [vmem:[%s3] sm:$0x1]
    %v123 = vlaneseq
    %v124 = vshrl.u32 %v123, 7
    %v125 = vsub.s32 0, %v124
    %v126 = vrot.slane %v121, %v125
    %v128 = vadd.f32 %v105, %v126
    %v129 = vadd.f32 %v106, %v126
    %v130 = vadd.f32 %v107, %v126
    %v131 = vadd.f32 %v108, %v126
    %v132 = vadd.f32 %v109, %v126
    %v133 = vadd.f32 %v110, %v126
    %v134 = vadd.f32 %v111, %v126
    %v135 = vadd.f32 %v112, %v126
    %v136 = vadd.f32 %v113, %v126
    %v137 = vadd.f32 %v114, %v126
    %v138 = vadd.f32 %v115, %v126
    %v139 = vadd.f32 %v116, %v126
    %v140 = vadd.f32 %v117, %v126
    %v141 = vadd.f32 %v118, %v126
    %v142 = vadd.f32 %v119, %v126
    %v143 = vadd.f32 %v120, %v126
    %v144 = vmax.f32 %v128, 0.0
    %v145 = vmax.f32 %v129, 0.0
    %v146 = vmax.f32 %v130, 0.0
    %v147 = vmax.f32 %v131, 0.0
    %v148 = vmax.f32 %v132, 0.0
    %v149 = vmax.f32 %v133, 0.0
    %v150 = vmax.f32 %v134, 0.0
    %v151 = vmax.f32 %v135, 0.0
    %v152 = vmax.f32 %v136, 0.0
    %v153 = vmax.f32 %v137, 0.0
    %v154 = vmax.f32 %v138, 0.0
    %v155 = vmax.f32 %v139, 0.0
    %v156 = vmax.f32 %v140, 0.0
    %v157 = vmax.f32 %v141, 0.0
    %v158 = vmax.f32 %v142, 0.0
    %v159 = vmax.f32 %v143, 0.0
    %v160 = vld [vmem:[%s4] sm:$0x1]
    %v162 = vlaneseq
    %v163 = vshrl.u32 %v162, 7
    %v164 = vsub.s32 0, %v163
    %v165 = vrot.slane %v160, %v164
    %v167 = vmul.f32 %v144, %v165
    %v168 = vmul.f32 %v145, %v165
    %v169 = vmul.f32 %v146, %v165
    %v170 = vmul.f32 %v147, %v165
    %v171 = vmul.f32 %v148, %v165
    %v172 = vmul.f32 %v149, %v165
    %v173 = vmul.f32 %v150, %v165
    %v174 = vmul.f32 %v151, %v165
    %v175 = vmul.f32 %v152, %v165
    %v176 = vmul.f32 %v153, %v165
    %v177 = vmul.f32 %v154, %v165
    %v178 = vmul.f32 %v155, %v165
    %v179 = vmul.f32 %v156, %v165
    %v180 = vmul.f32 %v157, %v165
    %v181 = vmul.f32 %v158, %v165
    %v182 = vmul.f32 %v159, %v165
    %vm183 = vcmask 261120
    %v184 = vsel %vm183, %v167, 0.0
    %185 = vadd.xlane.f32.xlu0 %v184
    %v186 = vpop.xlane.xlu0 %185
    %v187 = vsel %vm183, %v168, 0.0
    %188 = vadd.xlane.f32.xlu0 %v187
    %v189 = vpop.xlane.xlu0 %188
    %v190 = vsel %vm183, %v169, 0.0
    %191 = vadd.xlane.f32.xlu0 %v190
    %v192 = vpop.xlane.xlu0 %191
    %v193 = vsel %vm183, %v170, 0.0
    %194 = vadd.xlane.f32.xlu0 %v193
    %v195 = vpop.xlane.xlu0 %194
    %v196 = vsel %vm183, %v171, 0.0
    %197 = vadd.xlane.f32.xlu0 %v196
    %v198 = vpop.xlane.xlu0 %197
    %v199 = vsel %vm183, %v172, 0.0
    %200 = vadd.xlane.f32.xlu0 %v199
    %v201 = vpop.xlane.xlu0 %200
    %v202 = vsel %vm183, %v173, 0.0
    %203 = vadd.xlane.f32.xlu0 %v202
    %v204 = vpop.xlane.xlu0 %203
    %v205 = vsel %vm183, %v174, 0.0
    %206 = vadd.xlane.f32.xlu0 %v205
    %v207 = vpop.xlane.xlu0 %206
    %v208 = vsel %vm183, %v175, 0.0
    %209 = vadd.xlane.f32.xlu0 %v208
    %v210 = vpop.xlane.xlu0 %209
    %v211 = vsel %vm183, %v176, 0.0
    %212 = vadd.xlane.f32.xlu0 %v211
    %v213 = vpop.xlane.xlu0 %212
    %v214 = vsel %vm183, %v177, 0.0
    %215 = vadd.xlane.f32.xlu0 %v214
    %v216 = vpop.xlane.xlu0 %215
    %v217 = vsel %vm183, %v178, 0.0
    %218 = vadd.xlane.f32.xlu0 %v217
    %v219 = vpop.xlane.xlu0 %218
    %v220 = vsel %vm183, %v179, 0.0
    %221 = vadd.xlane.f32.xlu0 %v220
    %v222 = vpop.xlane.xlu0 %221
    %v223 = vsel %vm183, %v180, 0.0
    %224 = vadd.xlane.f32.xlu0 %v223
    %v225 = vpop.xlane.xlu0 %224
    %v226 = vsel %vm183, %v181, 0.0
    %227 = vadd.xlane.f32.xlu0 %v226
    %v228 = vpop.xlane.xlu0 %227
    %v229 = vsel %vm183, %v182, 0.0
    %230 = vadd.xlane.f32.xlu0 %v229
    %v231 = vpop.xlane.xlu0 %230
    %v232 = vld [vmem:[#allocation2] sm:$0x1]
    %v234 = vlaneseq
    %v235 = vshrl.u32 %v234, 7
    %v236 = vsub.s32 0, %v235
    %v237 = vrot.slane %v232, %v236
    %238 = vset.pattern.permute.xlu0 0
    %239 = vperm.xlu0 %238, %v237
    %v240 = vpop.permute.xlu0 %239
    %v242 = vadd.f32 %v186, %v240
    %v243 = vadd.f32 %v189, %v240
    %v244 = vadd.f32 %v192, %v240
    %v245 = vadd.f32 %v195, %v240
    %v246 = vadd.f32 %v198, %v240
    %v247 = vadd.f32 %v201, %v240
    %v248 = vadd.f32 %v204, %v240
    %v249 = vadd.f32 %v207, %v240
    %v250 = vadd.f32 %v210, %v240
    %v251 = vadd.f32 %v213, %v240
    %v252 = vadd.f32 %v216, %v240
    %v253 = vadd.f32 %v219, %v240
    %v254 = vadd.f32 %v222, %v240
    %v255 = vadd.f32 %v225, %v240
    %v256 = vadd.f32 %v228, %v240
    %v257 = vadd.f32 %v231, %v240
    %v260 = vunpack.c.l.s4 1966171168
    %v261 = vunpack.c.0.s8 %v260
    %v262 = vlaneseq
    %v263 = vshrl.u32 %v262, 7
    %v264 = vsub.s32 %v261, %v263
    %v265 = vrot.slane %v26, %v264
    %v266 = vcombine.high %v265, %v265
    %v268 = vunpack.c.l.s4 1966171168
    %v269 = vunpack.c.0.s8 %v268
    %v270 = vlaneseq
    %v271 = vshrl.u32 %v270, 7
    %v272 = vsub.s32 %v269, %v271
    %v273 = vrot.slane %v265, %v272
    %v275 = vunpack.c.l.s4 1966171168
    %v276 = vunpack.c.0.s8 %v275
    %v277 = vlaneseq
    %v278 = vshrl.u32 %v277, 7
    %v279 = vsub.s32 %v276, %v278
    %v280 = vrot.slane %v266, %v279
    %v281 = vmul.f32 %v242, 0.1
    %v282 = vmul.f32 %v243, 0.1
    %v283 = vmul.f32 %v244, 0.1
    %v284 = vmul.f32 %v245, 0.1
    %v285 = vmul.f32 %v246, 0.1
    %v286 = vmul.f32 %v247, 0.1
    %v287 = vmul.f32 %v248, 0.1
    %v288 = vmul.f32 %v249, 0.1
    %v289 = vmul.f32 %v250, 0.1
    %v290 = vmul.f32 %v251, 0.1
    %v291 = vmul.f32 %v252, 0.1
    %v292 = vmul.f32 %v253, 0.1
    %v293 = vmul.f32 %v254, 0.1
    %v294 = vmul.f32 %v255, 0.1
    %v295 = vmul.f32 %v256, 0.1
    %v296 = vmul.f32 %v257, 0.1
    %v297 = vlaneseq
    %v298 = vshrl.u32 %v297, 7
    %v299 = vsub.s32 0, %v298
    %v300 = vrot.slane %v273, %v299
    %v301 = vlaneseq
    %v302 = vshrl.u32 %v301, 7
    %v303 = vsub.s32 0, %v302
    %v304 = vrot.slane %v280, %v303
    %v307 = vadd.f32 %v300, %v281
    %v308 = vadd.f32 %v300, %v282
    %v309 = vadd.f32 %v300, %v283
    %v310 = vadd.f32 %v300, %v284
    %v311 = vadd.f32 %v300, %v285
    %v312 = vadd.f32 %v300, %v286
    %v313 = vadd.f32 %v300, %v287
    %v314 = vadd.f32 %v300, %v288
    %v315 = vadd.f32 %v304, %v289
    %v316 = vadd.f32 %v304, %v290
    %v317 = vadd.f32 %v304, %v291
    %v318 = vadd.f32 %v304, %v292
    %v319 = vadd.f32 %v304, %v293
    %v320 = vadd.f32 %v304, %v294
    %v321 = vadd.f32 %v304, %v295
    %v322 = vadd.f32 %v304, %v296
    %323 = vst [vmem:[#allocation3] sm:$0xff] %v307
    %324 = vst [vmem:[#allocation3 + $0x8] sm:$0xff] %v308
    %325 = vst [vmem:[#allocation3 + $0x10] sm:$0xff] %v309
    %326 = vst [vmem:[#allocation3 + $0x18] sm:$0xff] %v310
    %327 = vst [vmem:[#allocation3 + $0x20] sm:$0xff] %v311
    %328 = vst [vmem:[#allocation3 + $0x28] sm:$0xff] %v312
    %329 = vst [vmem:[#allocation3 + $0x30] sm:$0xff] %v313
    %330 = vst [vmem:[#allocation3 + $0x38] sm:$0xff] %v314
    %331 = vst [vmem:[#allocation3 + $0x40] sm:$0xff] %v315
    %332 = vst [vmem:[#allocation3 + $0x48] sm:$0xff] %v316
    %333 = vst [vmem:[#allocation3 + $0x50] sm:$0xff] %v317
    %334 = vst [vmem:[#allocation3 + $0x58] sm:$0xff] %v318
    %335 = vst [vmem:[#allocation3 + $0x60] sm:$0xff] %v319
    %336 = vst [vmem:[#allocation3 + $0x68] sm:$0xff] %v320
    %337 = vst [vmem:[#allocation3 + $0x70] sm:$0xff] %v321
    %338 = vst [vmem:[#allocation3 + $0x78] sm:$0xff] %v322
    // Predicated region
    $region26: #{tpu_custom_call.1} parent=1 // pred_check
      _
    $region27: #{tpu_custom_call.1} parent=1 // pred_check_branch
      %340 = sbr.rel (0) target = $region29
    $region28: #{tpu_custom_call.1} parent=1 // pred_region
      %s342 = ssub.s32 2048, 2048
      %343 = vsyncadd [#allocation4], %s342
      %s344 = sshll.u32 [#allocation3], 4
      %s345 = int_to_ptr.vmem [resolvable:$true] %s344
      %350 = dma.vmem_to_hbm [thread:$0]  %s345, 2048, %s6, [#allocation4], 128, 128, 8
    $region29: #{tpu_custom_call.1} parent=1 // pred_fallthru
      _
    // Predicated region
    $region30: #{tpu_custom_call.1} parent=1 // pred_check
      _
    $region31: #{tpu_custom_call.1} parent=1 // pred_check_branch
      %352 = sbr.rel (0) target = $region33
    $region32: #{tpu_custom_call.1} parent=1 // pred_region
      %353 = dma.done [#allocation4], 2048
    $region33: #{tpu_custom_call.1} parent=1 // pred_fallthru
      _
    %354 = vsyncpa [#allocation4], 1

</llo_original>
